<compile_context>
chip_gen: v7x
topology: tpu7x:2x2x1
jax: 0.10.0
libtpu: 0.0.40
codegen_flags: <defaults>
</compile_context>

<pallas_src>
import functools

import jax
import jax.numpy as jnp
from jax.experimental import pallas as pl
from jax.experimental.pallas import tpu as pltpu


_LANE = 128                      # pad softmax (lane) axis to a multiple of this
_SUBLANE = 8                     # row-tile granularity
_MAX_BLOCK_ROWS = 1024
_TILE_BYTES_TARGET = 2 * 1024 * 1024   # per in/out tile (each is double-buffered)


def _round_up(x, m):
    return (x + m - 1) // m * m


def _mix32(x):
    """SplitMix32-style avalanche hash on uint32 values (element-wise)."""
    x = x ^ (x >> 16)
    x = x * jnp.uint32(0x7FEB352D)
    x = x ^ (x >> 15)
    x = x * jnp.uint32(0x846CA68B)
    x = x ^ (x >> 16)
    return x


def _mask_softmax_dropout_kernel(info_ref, x_ref, mask_ref, o_ref, *,
                                 p, block_rows, seq_pad):
    # x_ref: (block_rows, seq_pad)   mask_ref: (1, seq_pad) resident
    x = x_ref[...].astype(jnp.float32)
    logits = x + mask_ref[...].astype(jnp.float32)          # broadcast over rows

    # numerically stable row-wise softmax over the lane axis
    row_max = jnp.max(logits, axis=-1, keepdims=True)
    e = jnp.exp(logits - row_max)
    denom = jnp.sum(e, axis=-1, keepdims=True)
    inv = 1.0 / denom
    if p > 0.0:
        inv = inv * (1.0 / (1.0 - p))   # fold inverted-dropout scale into the row reciprocal
    sm = e * inv

    if p > 0.0:
        # Counter-based PRNG on plain uint32 ops.  Deterministic and identical
        # regardless of tiling because the counter is built from global indices.
        seed = info_ref[0].astype(jnp.uint32)
        bidx = info_ref[1].astype(jnp.uint32)
        key = _mix32(seed ^ _mix32(bidx + jnp.uint32(0x9E3779B9)))

        tile_base = (pl.program_id(0) * block_rows).astype(jnp.uint32)
        rid = jax.lax.broadcasted_iota(jnp.int32, (block_rows, seq_pad), 0
                                       ).astype(jnp.uint32) + tile_base
        cid = jax.lax.broadcasted_iota(jnp.int32, (block_rows, seq_pad), 1
                                       ).astype(jnp.uint32)
        bits = _mix32((rid * jnp.uint32(seq_pad) + cid) ^ key)

        # drop with probability p: single unsigned compare on the raw bits
        thresh = jnp.uint32(min(int(round(p * (1 << 32))), (1 << 32) - 1))
        sm = jnp.where(bits >= thresh, sm, 0.0)

    o_ref[...] = sm.astype(o_ref.dtype)


def _one_batch(x2d, m2d, seed, batch_idx, p):
    rows, seq = x2d.shape
    seq_pad = _round_up(seq, _LANE)
    if seq_pad != seq:
        # lane-dense layout; padded lanes get -1e30 in the mask so they softmax to ~0
        x2d = jnp.pad(x2d, ((0, 0), (0, seq_pad - seq)))
        m2d = jnp.pad(m2d, ((0, 0), (0, seq_pad - seq)), constant_values=-1e30)

    if rows < _SUBLANE:
        block_rows = rows                                  # full-extent block
    else:
        limit = max(_SUBLANE,
                    _TILE_BYTES_TARGET // (seq_pad * x2d.dtype.itemsize))
        block_rows = min(rows, _MAX_BLOCK_ROWS, limit)
        block_rows = max(_SUBLANE, (block_rows // _SUBLANE) * _SUBLANE)

    grid = (pl.cdiv(rows, block_rows),)
    info = jnp.array([seed, batch_idx], dtype=jnp.int32)

    kernel = functools.partial(_mask_softmax_dropout_kernel,
                               p=float(p), block_rows=block_rows, seq_pad=seq_pad)

    out2d = pl.pallas_call(
        kernel,
        out_shape=jax.ShapeDtypeStruct((rows, seq_pad), x2d.dtype),
        grid=grid,
        in_specs=[
            pl.BlockSpec(memory_space=pltpu.MemorySpace.SMEM),       # [seed, batch_idx]
            pl.BlockSpec((block_rows, seq_pad), lambda g: (g, 0)),   # row tile of logits
            pl.BlockSpec((1, seq_pad), lambda g: (0, 0)),            # mask stays resident
        ],
        out_specs=pl.BlockSpec((block_rows, seq_pad), lambda g: (g, 0)),
        compiler_params=pltpu.CompilerParams(
            dimension_semantics=("parallel",),     # independent row tiles (megacore on v7x)
            vmem_limit_bytes=32 * 1024 * 1024),
    )(info, x2d, m2d)

    if seq_pad != seq:
        out2d = out2d[:, :seq]
    return out2d


def masked_softmax_dropout(batch, seqlens, input_flat, mask_flat, heads,
                           dropout_prob=0.1, seed=0):
    """JAX/Pallas equivalent of BaseMaskSoftmaxDropout.forward.

    seqlens must be host-known Python ints (the PyTorch module calls .item()).
    """
    # TODO(synk): fuse the per-batch loop into one pallas_call over the packed
    # flat buffers via PrefetchScalarGridSpec'd per-batch offsets; the ragged
    # (heads*seq_i, seq_i) reshape of a flat buffer cannot be expressed by a
    # BlockSpec without padding every batch to the max seq.
    outs = []
    cnt = 0
    mask_cnt = 0
    for i in range(batch):
        seq = int(seqlens[i])
        rows = heads * seq
        n = rows * seq
        x2d = input_flat[cnt:cnt + n].reshape(rows, seq)
        m2d = mask_flat[mask_cnt:mask_cnt + seq].reshape(1, seq)
        out2d = _one_batch(x2d, m2d, int(seed), i, float(dropout_prob))
        outs.append(out2d.reshape(-1))
        cnt += n
        mask_cnt += seq
    return jnp.concatenate(outs)


if __name__ == "__main__":
    key = jax.random.PRNGKey(0)
    k_in, k_mask = jax.random.split(key)

    batch = 2
    heads = 4
    seqlens = [8, 6]                        # host-known, as in the PyTorch module
    total_in = sum(heads * s * s for s in seqlens)
    total_mask = sum(seqlens)

    input_flat = jax.random.normal(k_in, (total_in,), dtype=jnp.float32)
    mask_flat = jnp.where(
        jax.random.uniform(k_mask, (total_mask,)) > 0.75,
        jnp.float32(-1e4), jnp.float32(0.0))

    # Pure-JAX reference (softmax only, no dropout).
    refs = []
    cnt = mcnt = 0
    for s in seqlens:
        n = heads * s * s
        xv = input_flat[cnt:cnt + n].reshape(heads * s, s)
        mv = mask_flat[mcnt:mcnt + s].reshape(1, s)
        refs.append(jax.nn.softmax(xv + mv, axis=-1).reshape(-1))
        cnt += n
        mcnt += s
    ref = jnp.concatenate(refs)

    # 1) dropout disabled: must match the softmax reference.
    out0 = jax.block_until_ready(
        masked_softmax_dropout(batch, seqlens, input_flat, mask_flat, heads,
                               dropout_prob=0.0))
    assert out0.shape == input_flat.shape
    assert jnp.allclose(out0, ref, atol=1e-5), "softmax mismatch vs reference"

    # 2) dropout enabled: every element is either 0 (dropped) or ref / (1-p).
    p = 0.1
    out1 = jax.block_until_ready(
        masked_softmax_dropout(batch, seqlens, input_flat, mask_flat, heads,
                               dropout_prob=p, seed=1234))
    assert out1.shape == input_flat.shape
    scaled = ref / (1.0 - p)
    ok = jnp.logical_or(jnp.abs(out1) <= 1e-8, jnp.abs(out1 - scaled) <= 1e-5)
    assert bool(jnp.all(ok)), "dropout output not in {0, softmax/(1-p)}"

    print("KERNEL_OK")
</pallas_src>

<mosaic_0001>
module attributes {stable_mosaic.version = 11 : i64} {
  func.func @_mask_softmax_dropout_kernel(%arg0: i32, %arg1: memref<2xi32, #tpu.memory_space<smem>>, %arg2: memref<32x128xf32, #tpu.memory_space<vmem>>, %arg3: memref<1x128xf32, #tpu.memory_space<vmem>>, %arg4: memref<32x128xf32, #tpu.memory_space<vmem>>) attributes {dimension_semantics = [#tpu.dimension_semantics<parallel>], iteration_bounds = array<i64: 1>, scalar_prefetch = 0 : i64, scratch_operands = 0 : i64, tpu.core_type = #tpu.core_type<tc>, window_params = [{transform_indices = @transform_0, window_bounds = array<i64: 2>}, {transform_indices = @transform_1, window_bounds = array<i64: 32, 128>}, {pipeline_mode = #tpu.pipeline_mode<synchronous>, transform_indices = @transform_2, window_bounds = array<i64: 1, 128>}, {transform_indices = @transform_3, window_bounds = array<i64: 32, 128>}]} {
    %c0 = arith.constant 0 : index
    %c0_0 = arith.constant 0 : index
    %0 = vector.load %arg2[%c0, %c0_0] : memref<32x128xf32, #tpu.memory_space<vmem>>, vector<32x128xf32>
    %c0_1 = arith.constant 0 : index
    %c0_2 = arith.constant 0 : index
    %1 = vector.load %arg3[%c0_1, %c0_2] : memref<1x128xf32, #tpu.memory_space<vmem>>, vector<1x128xf32>
    %2 = vector.broadcast %1 : vector<1x128xf32> to vector<32x128xf32>
    %3 = arith.addf %0, %2 : vector<32x128xf32>
    %cst = arith.constant dense<0xFF800000> : vector<32xf32>
    %4 = vector.multi_reduction <maximumf>, %3, %cst [1] : vector<32x128xf32> to vector<32xf32>
    %5 = vector.shape_cast %4 : vector<32xf32> to vector<32x1xf32>
    %6 = vector.broadcast %5 : vector<32x1xf32> to vector<32x128xf32>
    %7 = arith.subf %3, %6 : vector<32x128xf32>
    %8 = math.exp %7 : vector<32x128xf32>
    %cst_3 = arith.constant dense<0.000000e+00> : vector<32xf32>
    %9 = vector.multi_reduction <add>, %8, %cst_3 [1] : vector<32x128xf32> to vector<32xf32>
    %10 = vector.shape_cast %9 : vector<32xf32> to vector<32x1xf32>
    %cst_4 = arith.constant 1.000000e+00 : f32
    %11 = vector.broadcast %cst_4 : f32 to vector<32x1xf32>
    %12 = arith.divf %11, %10 : vector<32x1xf32>
    %13 = vector.broadcast %12 : vector<32x1xf32> to vector<32x128xf32>
    %14 = arith.mulf %8, %13 : vector<32x128xf32>
    %c0_5 = arith.constant 0 : index
    %c0_6 = arith.constant 0 : index
    %15 = vector.load %arg4[%c0_5, %c0_6] : memref<32x128xf32, #tpu.memory_space<vmem>>, vector<32x128xf32>
    tpu.vector_store %arg4[%c0_5, %c0_6], %14 {strides = array<i32>} : memref<32x128xf32, #tpu.memory_space<vmem>>, vector<32x128xf32>,
    return
  }
  func.func @transform_0(%arg0: i32) -> i32 {
    %c0_i32 = arith.constant 0 : i32
    %c0_i32_0 = arith.constant 0 : i32
    return %c0_i32 : i32
  }
  func.func @transform_1(%arg0: i32) -> (i32, i32) {
    %c0_i32 = arith.constant 0 : i32
    %c0_i32_0 = arith.constant 0 : i32
    return %arg0, %c0_i32 : i32, i32
  }
  func.func @transform_2(%arg0: i32) -> (i32, i32) {
    %c0_i32 = arith.constant 0 : i32
    %c0_i32_0 = arith.constant 0 : i32
    %c0_i32_1 = arith.constant 0 : i32
    return %c0_i32, %c0_i32_0 : i32, i32
  }
  func.func @transform_3(%arg0: i32) -> (i32, i32) {
    %c0_i32 = arith.constant 0 : i32
    %c0_i32_0 = arith.constant 0 : i32
    return %arg0, %c0_i32 : i32, i32
  }
}

</mosaic_0001>

<llo_original>
// kernel: tpu_custom_call.1
$region0: #{tpu_custom_call.1}
  #allocation0 [shape = 'u32[]', space=smem, size = 0x4, offset = 0x4, fixed_abs, tag = 'smem constant byte address 0x4 - core index']
  #allocation1 [shape = 'u32[144,128]{1,0:T(1,128)}', space=vmem, size = 0x12000, scoped, tag = 'internal scratch']
  %s0 = inlined_call_operand.hbm [shape: s32[2], index: 0, kind: input, shape index: {}]
  %s1 = inlined_call_operand.hbm [shape: f32[32,128], index: 1, kind: input, shape index: {}]
  %s2 = inlined_call_operand.vmem [shape: f32[1,128], index: 2, kind: input, shape index: {}]
  %s3 = inlined_call_operand.hbm [shape: f32[32,128], index: 3, kind: output, shape index: {}]
  %s4 = sld [smem:[#allocation0]]
  $region30: #{tpu_custom_call.1} parent=0
    _
  %s6 = ssub.s32 1, %s4
  %s7 = scalar_select 0, %s6, %s4
  $region1: #{tpu_custom_call.1} parent=0
    #allocation2 [shape = 'u8[512]{0}', space=smem, size = 0x200, scoped, tag = 'input window, operand 0, single buffered']
    #allocation3 [shape = 's32[1]{0}', space=sflag, size = 0x4, scoped, tag = 'scoped memory for tpu_custom_call.1']
    #allocation4 [shape = 's32[1]{0}', space=sflag, size = 0x4, scoped, tag = 'scoped memory for tpu_custom_call.1']
    #allocation5 [shape = 's32[1]{0}', space=sflag, size = 0x4, scoped, tag = 'scoped memory for tpu_custom_call.1']
    #allocation6 [shape = 'u8[16384]{0}', space=vmem, size = 0x4000, scoped, tag = 'input window, operand 1, single buffered']
    #allocation7 [shape = 'u8[16384]{0}', space=vmem, size = 0x4000, scoped, tag = 'output window, operand 0, single buffered']
    %8 = vsyncpa [#allocation5], 0
    %9 = vsyncpa [#allocation3], 0
    %10 = vsyncpa [#allocation4], 0
    // Predicated region
    $region2: #{tpu_custom_call.1} parent=1 // pred_check
      _
    $region3: #{tpu_custom_call.1} parent=1 // pred_check_branch
      %12 = sbr.rel (0) target = $region5
    $region4: #{tpu_custom_call.1} parent=1 // pred_region
      %s14 = ssub.s32 16, 16
      %15 = vsyncadd [#allocation5], %s14
      %18 = dma.hbm_to_smem %s0, 16, [#allocation2], [#allocation5]
    $region5: #{tpu_custom_call.1} parent=1 // pred_fallthru
      _
    // Predicated region
    $region6: #{tpu_custom_call.1} parent=1 // pred_check
      _
    $region7: #{tpu_custom_call.1} parent=1 // pred_check_branch
      %20 = sbr.rel (0) target = $region9
    $region8: #{tpu_custom_call.1} parent=1 // pred_region
      %s22 = ssub.s32 512, 512
      %23 = vsyncadd [#allocation3], %s22
      %s24 = sshll.u32 [#allocation6], 4
      %s25 = int_to_ptr.vmem [resolvable:$true] %s24
      %30 = dma.hbm_to_vmem [thread:$0]  %s1, 512, %s25, [#allocation3], 128, 128, 8
    $region9: #{tpu_custom_call.1} parent=1 // pred_fallthru
      _
    // Predicated region
    $region10: #{tpu_custom_call.1} parent=1 // pred_check
      _
    $region11: #{tpu_custom_call.1} parent=1 // pred_check_branch
      %32 = sbr.rel (0) target = $region13
    $region12: #{tpu_custom_call.1} parent=1 // pred_region
      _
    $region13: #{tpu_custom_call.1} parent=1 // pred_fallthru
      _
    // Predicated region
    $region14: #{tpu_custom_call.1} parent=1 // pred_check
      _
    $region15: #{tpu_custom_call.1} parent=1 // pred_check_branch
      %34 = sbr.rel (0) target = $region17
    $region16: #{tpu_custom_call.1} parent=1 // pred_region
      %35 = dma.done [#allocation5], 16
    $region17: #{tpu_custom_call.1} parent=1 // pred_fallthru
      _
    // Predicated region
    $region18: #{tpu_custom_call.1} parent=1 // pred_check
      _
    $region19: #{tpu_custom_call.1} parent=1 // pred_check_branch
      %37 = sbr.rel (0) target = $region21
    $region20: #{tpu_custom_call.1} parent=1 // pred_region
      %38 = dma.done [#allocation3], 512
    $region21: #{tpu_custom_call.1} parent=1 // pred_fallthru
      _
    %39 = sfence
    %v40 = vld [vmem:[#allocation6] sm:$0xff]
    %v41 = vld [vmem:[#allocation6 + $0x8] sm:$0xff]
    %v42 = vld [vmem:[#allocation6 + $0x10] sm:$0xff]
    %v43 = vld [vmem:[#allocation6 + $0x18] sm:$0xff]
    %v44 = vld [vmem:[%s2] sm:$0x1]
    %v46 = vlaneseq
    %v47 = vshrl.u32 %v46, 7
    %v48 = vsub.s32 0, %v47
    %v49 = vrot.slane %v44, %v48
    %v51 = vadd.f32 %v40, %v49
    %v52 = vadd.f32 %v41, %v49
    %v53 = vadd.f32 %v42, %v49
    %v54 = vadd.f32 %v43, %v49
    %55 = vmax.xlane.f32.xlu0 %v51
    %v56 = vpop.xlane.xlu0 %55
    %57 = vmax.xlane.f32.xlu0 %v52
    %v58 = vpop.xlane.xlu0 %57
    %59 = vmax.xlane.f32.xlu0 %v53
    %v60 = vpop.xlane.xlu0 %59
    %61 = vmax.xlane.f32.xlu0 %v54
    %v62 = vpop.xlane.xlu0 %61
    %v63 = vsub.f32 %v51, %v56
    %v64 = vsub.f32 %v52, %v58
    %v65 = vsub.f32 %v53, %v60
    %v66 = vsub.f32 %v54, %v62
    %v67 = vmul.f32 %v63, 1.442695
    %v68 = vpow.pop %v67
    %v69 = vmul.f32 %v64, 1.442695
    %v70 = vpow.pop %v69
    %v71 = vmul.f32 %v65, 1.442695
    %v72 = vpow.pop %v71
    %v73 = vmul.f32 %v66, 1.442695
    %v74 = vpow.pop %v73
    %75 = vadd.xlane.f32.xlu0 %v68
    %v76 = vpop.xlane.xlu0 %75
    %77 = vadd.xlane.f32.xlu0 %v70
    %v78 = vpop.xlane.xlu0 %77
    %79 = vadd.xlane.f32.xlu0 %v72
    %v80 = vpop.xlane.xlu0 %79
    %81 = vadd.xlane.f32.xlu0 %v74
    %v82 = vpop.xlane.xlu0 %81
    %v83 = vrcp.pop %v76
    %v84 = vmul.f32 1.0, %v83
    %v85 = vrcp.pop %v78
    %v86 = vmul.f32 1.0, %v85
    %v87 = vrcp.pop %v80
    %v88 = vmul.f32 1.0, %v87
    %v89 = vrcp.pop %v82
    %v90 = vmul.f32 1.0, %v89
    %v91 = vmul.f32 %v68, %v84
    %v92 = vmul.f32 %v70, %v86
    %v93 = vmul.f32 %v72, %v88
    %v94 = vmul.f32 %v74, %v90
    %95 = vst [vmem:[#allocation7] sm:$0xff] %v91
    %96 = vst [vmem:[#allocation7 + $0x8] sm:$0xff] %v92
    %97 = vst [vmem:[#allocation7 + $0x10] sm:$0xff] %v93
    %98 = vst [vmem:[#allocation7 + $0x18] sm:$0xff] %v94
    // Predicated region
    $region22: #{tpu_custom_call.1} parent=1 // pred_check
      _
    $region23: #{tpu_custom_call.1} parent=1 // pred_check_branch
      %100 = sbr.rel (0) target = $region25
    $region24: #{tpu_custom_call.1} parent=1 // pred_region
      %s102 = ssub.s32 512, 512
      %103 = vsyncadd [#allocation4], %s102
      %s104 = sshll.u32 [#allocation7], 4
      %s105 = int_to_ptr.vmem [resolvable:$true] %s104
      %110 = dma.vmem_to_hbm [thread:$0]  %s105, 512, %s3, [#allocation4], 128, 128, 8
    $region25: #{tpu_custom_call.1} parent=1 // pred_fallthru
      _
    // Predicated region
    $region26: #{tpu_custom_call.1} parent=1 // pred_check
      _
    $region27: #{tpu_custom_call.1} parent=1 // pred_check_branch
      %112 = sbr.rel (0) target = $region29
    $region28: #{tpu_custom_call.1} parent=1 // pred_region
      %113 = dma.done [#allocation4], 512
    $region29: #{tpu_custom_call.1} parent=1 // pred_fallthru
      _
    %114 = vsyncpa [#allocation3], 1
    %115 = vsyncpa [#allocation4], 1
    %116 = vsyncpa [#allocation5], 1

</llo_original>
